<compile_context>
chip_gen: v5e
topology: v5e:2x2
jax: 0.10.0
libtpu: 0.0.40
codegen_flags: <defaults>
</compile_context>

<pallas_src>
import jax
import jax.numpy as jnp
from jax.experimental import pallas as pl
from jax.experimental.pallas import tpu as pltpu

# ---- architecture constants (small, consistent with the module's forward) ----
SCAN_SIZE = 32
CIN = 1                 # lidar channels
COUT = 8                # conv output channels
KSIZE = 5
STRIDE = 2
LOUT = (SCAN_SIZE - KSIZE) // STRIDE + 1          # 14
LIDAR_FLAT = COUT * LOUT                          # 112
LIDAR_FEAT = 64
ORI_FEAT = 16
DIST_FEAT = 16
VEL_FEAT = 16
AUX_FEAT = ORI_FEAT + DIST_FEAT + VEL_FEAT        # 48
CONCAT_IN = LIDAR_FEAT + AUX_FEAT                 # 112
OUT_FEATURES = 32       # Inputspace.out_features (feeds value head)

# ---- packed-weight slab layout (all row starts are multiples of 8 sublanes) ----
PAD_LANES = 128
ROW_CONV = 0                       # 32 rows : conv+flatten as (32,128) matmul
ROW_LD = 32                        # 128 rows: lidar dense (112 real + 16 zero pad)
ROW_CT = 160                       # 64 rows : concat-dense rows for the lidar block
ROW_CB = 224                       # 48 rows : concat-dense rows for ori|dist|vel
WB_ROWS = ROW_CB + AUX_FEAT        # 272
WS_ROWS = 16                       # small row slab (biases + VPU weight rows)


def _vmem_spec():
    # Full-array blocks, resident in VMEM (everything here is tiny: < 200 KiB).
    return pl.BlockSpec(memory_space=pltpu.MemorySpace.VMEM)


# ------------------------------ fused kernel ---------------------------------
def critic_fused_kernel(laser_ref, ori_ref, dist_ref, vel_ref, wb_ref, ws_ref, out_ref):
    relu = lambda v: jnp.maximum(v, 0.0)
    dot = lambda a, b: jnp.dot(a, b, preferred_element_type=jnp.float32)

    # (1) Conv1d(k=5, s=2) + channel-major Flatten, folded into one (B,32)@(32,128)
    #     matmul (weights baked host-side).  Columns 112:128 are zero padding.
    lidar = relu(dot(laser_ref[...], wb_ref[ROW_CONV:ROW_CONV + SCAN_SIZE, :])
                 + ws_ref[0:1, :])                                           # (B, 128)

    # (2) lidar dense 112(+16 zero pad) -> 64, K=128 lane-aligned.
    lid = relu(dot(lidar, wb_ref[ROW_LD:ROW_CT, 0:LIDAR_FEAT])
               + ws_ref[1:2, 0:LIDAR_FEAT])                                  # (B, 64)

    # (3) ori/dist/vel dense heads fused into 5 VPU broadcast-FMAs over 48 lanes
    #     (no K=1/K=2 MXU matmuls).  Lanes: [0:16)=ori, [16:32)=dist, [32:48)=vel.
    aux = relu(ori_ref[:, 0:1] * ws_ref[2:3, 0:AUX_FEAT]
               + ori_ref[:, 1:2] * ws_ref[3:4, 0:AUX_FEAT]
               + dist_ref[:, 0:1] * ws_ref[4:5, 0:AUX_FEAT]
               + vel_ref[:, 0:1] * ws_ref[5:6, 0:AUX_FEAT]
               + vel_ref[:, 1:2] * ws_ref[6:7, 0:AUX_FEAT]
               + ws_ref[7:8, 0:AUX_FEAT])                                    # (B, 48)

    # (4) torch.cat([lid, ori, dis, vel], 1) @ w_c as two aligned row-block matmuls
    #     (avoids an in-kernel concatenate entirely; 2 MXU pushes instead of 4).
    h = relu(dot(lid, wb_ref[ROW_CT:ROW_CT + LIDAR_FEAT, 0:OUT_FEATURES])
             + dot(aux, wb_ref[ROW_CB:ROW_CB + AUX_FEAT, 0:OUT_FEATURES])
             + ws_ref[8:9, 0:OUT_FEATURES])                                  # (B, 32)

    # (5) value = nn.Linear(out_features, 1): N=1 done on VPU + lane reduce.
    out_ref[...] = (jnp.sum(h * ws_ref[9:10, 0:OUT_FEATURES], axis=-1, keepdims=True)
                    + ws_ref[10:11, 0:1])                                    # (B, 1)


# ------------------------------ wrapper ---------------------------------------
def critic_forward(packed, laser, orientation, distance, velocity):
    """laser: (B, CIN, SCAN_SIZE) NCW; others: (B, feat). Returns value (B, 1)."""
    B = laser.shape[0]
    laser2d = laser.reshape(B, SCAN_SIZE)        # CIN == 1, metadata-only reshape
    args = (laser2d, orientation, distance, velocity,
            packed["w_big"], packed["w_small"])
    # NOTE: for large RL rollout batches, add grid=(B // block,) with row-blocked
    # BlockSpecs and dimension_semantics=("parallel",); gridless is optimal at B=2.
    return pl.pallas_call(
        critic_fused_kernel,
        out_shape=jax.ShapeDtypeStruct((B, 1), jnp.float32),
        in_specs=[_vmem_spec()] * len(args),
        out_specs=_vmem_spec(),
    )(*args)


# ------------------------------ parameters ------------------------------------
def init_params(key):
    ks = jax.random.split(key, 16)
    w = lambda k, shape: 0.1 * jax.random.normal(k, shape, dtype=jnp.float32)
    return dict(
        conv_w=w(ks[0], (COUT, CIN, KSIZE)),      # PyTorch Conv1d weight layout
        conv_b=w(ks[1], (COUT,)),
        w_ld=w(ks[2], (LIDAR_FLAT, LIDAR_FEAT)),  b_ld=w(ks[3], (LIDAR_FEAT,)),
        w_o=w(ks[4], (2, ORI_FEAT)),              b_o=w(ks[5], (ORI_FEAT,)),
        w_d=w(ks[6], (1, DIST_FEAT)),             b_d=w(ks[7], (DIST_FEAT,)),
        w_v=w(ks[8], (2, VEL_FEAT)),              b_v=w(ks[9], (VEL_FEAT,)),
        w_c=w(ks[10], (CONCAT_IN, OUT_FEATURES)), b_c=w(ks[11], (OUT_FEATURES,)),
        w_val=w(ks[12], (OUT_FEATURES, 1)),       b_val=w(ks[13], (1,)),
    )


def pack_params(raw):
    """One-time host-side packing of all params into two lane-aligned f32 slabs."""
    # Conv1d + channel-major Flatten as a (SCAN_SIZE, 128) dense matrix M with
    # M[STRIDE*l + k, c*LOUT + l] = conv_w[c, 0, k]   (column order == torch Flatten).
    wk = raw["conv_w"][:, 0, :]                                   # (COUT, K)
    c = jnp.arange(COUT)[:, None, None]
    l = jnp.arange(LOUT)[None, :, None]
    k = jnp.arange(KSIZE)[None, None, :]
    rows = jnp.broadcast_to(STRIDE * l + k, (COUT, LOUT, KSIZE)).reshape(-1)
    cols = jnp.broadcast_to(c * LOUT + l, (COUT, LOUT, KSIZE)).reshape(-1)
    vals = jnp.broadcast_to(wk[:, None, :], (COUT, LOUT, KSIZE)).reshape(-1)
    w_conv_mm = jnp.zeros((SCAN_SIZE, PAD_LANES), jnp.float32).at[rows, cols].set(vals)
    b_conv_flat = jnp.repeat(raw["conv_b"], LOUT)                 # (112,), channel-major

    w_big = jnp.zeros((WB_ROWS, PAD_LANES), jnp.float32)
    w_big = w_big.at[ROW_CONV:ROW_CONV + SCAN_SIZE, :].set(w_conv_mm)
    w_big = w_big.at[ROW_LD:ROW_LD + LIDAR_FLAT, :LIDAR_FEAT].set(raw["w_ld"])
    w_big = w_big.at[ROW_CT:ROW_CT + LIDAR_FEAT, :OUT_FEATURES].set(raw["w_c"][:LIDAR_FEAT])
    w_big = w_big.at[ROW_CB:ROW_CB + AUX_FEAT, :OUT_FEATURES].set(raw["w_c"][LIDAR_FEAT:])

    ws = jnp.zeros((WS_ROWS, PAD_LANES), jnp.float32)
    ws = ws.at[0, :LIDAR_FLAT].set(b_conv_flat)                   # conv bias (flattened)
    ws = ws.at[1, :LIDAR_FEAT].set(raw["b_ld"])                   # lidar dense bias
    ws = ws.at[2, 0:ORI_FEAT].set(raw["w_o"][0])                  # aux tap: ori[:,0]
    ws = ws.at[3, 0:ORI_FEAT].set(raw["w_o"][1])                  # aux tap: ori[:,1]
    ws = ws.at[4, ORI_FEAT:ORI_FEAT + DIST_FEAT].set(raw["w_d"][0])          # dist[:,0]
    ws = ws.at[5, ORI_FEAT + DIST_FEAT:AUX_FEAT].set(raw["w_v"][0])          # vel[:,0]
    ws = ws.at[6, ORI_FEAT + DIST_FEAT:AUX_FEAT].set(raw["w_v"][1])          # vel[:,1]
    ws = ws.at[7, 0:ORI_FEAT].set(raw["b_o"])                     # aux bias row
    ws = ws.at[7, ORI_FEAT:ORI_FEAT + DIST_FEAT].set(raw["b_d"])
    ws = ws.at[7, ORI_FEAT + DIST_FEAT:AUX_FEAT].set(raw["b_v"])
    ws = ws.at[8, :OUT_FEATURES].set(raw["b_c"])                  # concat-dense bias
    ws = ws.at[9, :OUT_FEATURES].set(raw["w_val"][:, 0])          # value-head weight row
    ws = ws.at[10, 0].set(raw["b_val"][0])                        # value-head bias
    return dict(w_big=w_big, w_small=ws)


# ---------------------- pure-JAX reference (correctness) ----------------------
def critic_forward_ref(raw, laser, ori, dist, vel):
    hp = jax.lax.Precision.HIGHEST
    x = laser[:, 0, :]
    idx = jnp.arange(LOUT)[:, None] * STRIDE + jnp.arange(KSIZE)[None, :]
    patches = x[:, idx]                                            # (B, LOUT, K)
    conv = jnp.einsum("blk,ck->bcl", patches, raw["conv_w"][:, 0, :], precision=hp)
    conv = jax.nn.relu(conv + raw["conv_b"][None, :, None])
    lid_flat = conv.reshape(x.shape[0], LIDAR_FLAT)                # torch Flatten (NCW)
    lid = jax.nn.relu(jnp.dot(lid_flat, raw["w_ld"], precision=hp) + raw["b_ld"])
    o = jax.nn.relu(jnp.dot(ori, raw["w_o"], precision=hp) + raw["b_o"])
    d = jax.nn.relu(jnp.dot(dist, raw["w_d"], precision=hp) + raw["b_d"])
    v = jax.nn.relu(jnp.dot(vel, raw["w_v"], precision=hp) + raw["b_v"])
    cat = jnp.concatenate([lid, o, d, v], axis=1)
    h = jax.nn.relu(jnp.dot(cat, raw["w_c"], precision=hp) + raw["b_c"])
    return jnp.dot(h, raw["w_val"], precision=hp) + raw["b_val"]


if __name__ == "__main__":
    key = jax.random.PRNGKey(0)
    pkey, k1, k2, k3, k4 = jax.random.split(key, 5)

    raw = init_params(pkey)
    packed = pack_params(raw)

    B = 2
    laser = jax.random.normal(k1, (B, CIN, SCAN_SIZE), dtype=jnp.float32)
    orientation_to_goal = jax.random.normal(k2, (B, 2), dtype=jnp.float32)
    distance_to_goal = jax.random.normal(k3, (B, 1), dtype=jnp.float32)
    velocity = jax.random.normal(k4, (B, 2), dtype=jnp.float32)

    value = jax.jit(critic_forward)(packed, laser, orientation_to_goal,
                                    distance_to_goal, velocity)
    value = jax.block_until_ready(value)
    assert value.shape == (B, 1) and value.dtype == jnp.float32
    assert bool(jnp.all(jnp.isfinite(value)))

    ref = critic_forward_ref(raw, laser, orientation_to_goal, distance_to_goal, velocity)
    max_err = float(jnp.max(jnp.abs(value - ref)))
    assert max_err < 2e-3, f"mismatch vs pure-JAX reference: {max_err}"

    print("KERNEL_OK")
</pallas_src>

<mosaic_0001>
module attributes {stable_mosaic.version = 11 : i64} {
  func.func @critic_fused_kernel(%arg0: memref<2x32xf32, #tpu.memory_space<vmem>>, %arg1: memref<2x2xf32, #tpu.memory_space<vmem>>, %arg2: memref<2x1xf32, #tpu.memory_space<vmem>>, %arg3: memref<2x2xf32, #tpu.memory_space<vmem>>, %arg4: memref<272x128xf32, #tpu.memory_space<vmem>>, %arg5: memref<16x128xf32, #tpu.memory_space<vmem>>, %arg6: memref<2x1xf32, #tpu.memory_space<vmem>>) attributes {dimension_semantics = [], scalar_prefetch = 0 : i64, scratch_operands = 0 : i64, tpu.core_type = #tpu.core_type<tc>} {
    %c0 = arith.constant 0 : index
    %c0_0 = arith.constant 0 : index
    %0 = vector.load %arg0[%c0, %c0_0] : memref<2x32xf32, #tpu.memory_space<vmem>>, vector<2x32xf32>
    %c0_1 = arith.constant 0 : index
    %c0_2 = arith.constant 0 : index
    %1 = vector.load %arg4[%c0_1, %c0_2] : memref<272x128xf32, #tpu.memory_space<vmem>>, vector<32x128xf32>
    %cst = arith.constant dense<0.000000e+00> : vector<2x128xf32>
    %2 = tpu.matmul %0, %1, %cst {dimension_numbers = #tpu.dot_dimension_numbers<[1], [0], [0], [1], [0, 0, 1, 1], [], []>} : vector<2x32xf32>, vector<32x128xf32>, vector<2x128xf32> -> vector<2x128xf32>
    %c0_3 = arith.constant 0 : index
    %c0_4 = arith.constant 0 : index
    %3 = vector.load %arg5[%c0_3, %c0_4] : memref<16x128xf32, #tpu.memory_space<vmem>>, vector<1x128xf32>
    %4 = vector.broadcast %3 : vector<1x128xf32> to vector<2x128xf32>
    %5 = arith.addf %2, %4 : vector<2x128xf32>
    %cst_5 = arith.constant 0.000000e+00 : f32
    %6 = vector.broadcast %cst_5 : f32 to vector<2x128xf32>
    %7 = arith.maximumf %5, %6 : vector<2x128xf32>
    %c32 = arith.constant 32 : index
    %c0_6 = arith.constant 0 : index
    %8 = vector.load %arg4[%c32, %c0_6] : memref<272x128xf32, #tpu.memory_space<vmem>>, vector<128x64xf32>
    %cst_7 = arith.constant dense<0.000000e+00> : vector<2x64xf32>
    %9 = tpu.matmul %7, %8, %cst_7 {dimension_numbers = #tpu.dot_dimension_numbers<[1], [0], [0], [1], [0, 0, 1, 1], [], []>} : vector<2x128xf32>, vector<128x64xf32>, vector<2x64xf32> -> vector<2x64xf32>
    %c1 = arith.constant 1 : index
    %c0_8 = arith.constant 0 : index
    %10 = vector.load %arg5[%c1, %c0_8] : memref<16x128xf32, #tpu.memory_space<vmem>>, vector<1x64xf32>
    %11 = vector.broadcast %10 : vector<1x64xf32> to vector<2x64xf32>
    %12 = arith.addf %9, %11 : vector<2x64xf32>
    %cst_9 = arith.constant 0.000000e+00 : f32
    %13 = vector.broadcast %cst_9 : f32 to vector<2x64xf32>
    %14 = arith.maximumf %12, %13 : vector<2x64xf32>
    %c0_10 = arith.constant 0 : index
    %c0_11 = arith.constant 0 : index
    %15 = vector.load %arg1[%c0_10, %c0_11] : memref<2x2xf32, #tpu.memory_space<vmem>>, vector<2x1xf32>
    %c2 = arith.constant 2 : index
    %c0_12 = arith.constant 0 : index
    %16 = vector.load %arg5[%c2, %c0_12] : memref<16x128xf32, #tpu.memory_space<vmem>>, vector<1x48xf32>
    %17 = vector.broadcast %15 : vector<2x1xf32> to vector<2x48xf32>
    %18 = vector.broadcast %16 : vector<1x48xf32> to vector<2x48xf32>
    %19 = arith.mulf %17, %18 : vector<2x48xf32>
    %c0_13 = arith.constant 0 : index
    %c1_14 = arith.constant 1 : index
    %20 = vector.load %arg1[%c0_13, %c1_14] : memref<2x2xf32, #tpu.memory_space<vmem>>, vector<2x1xf32>
    %c3 = arith.constant 3 : index
    %c0_15 = arith.constant 0 : index
    %21 = vector.load %arg5[%c3, %c0_15] : memref<16x128xf32, #tpu.memory_space<vmem>>, vector<1x48xf32>
    %22 = vector.broadcast %20 : vector<2x1xf32> to vector<2x48xf32>
    %23 = vector.broadcast %21 : vector<1x48xf32> to vector<2x48xf32>
    %24 = arith.mulf %22, %23 : vector<2x48xf32>
    %25 = arith.addf %19, %24 : vector<2x48xf32>
    %c0_16 = arith.constant 0 : index
    %c0_17 = arith.constant 0 : index
    %26 = vector.load %arg2[%c0_16, %c0_17] : memref<2x1xf32, #tpu.memory_space<vmem>>, vector<2x1xf32>
    %c4 = arith.constant 4 : index
    %c0_18 = arith.constant 0 : index
    %27 = vector.load %arg5[%c4, %c0_18] : memref<16x128xf32, #tpu.memory_space<vmem>>, vector<1x48xf32>
    %28 = vector.broadcast %26 : vector<2x1xf32> to vector<2x48xf32>
    %29 = vector.broadcast %27 : vector<1x48xf32> to vector<2x48xf32>
    %30 = arith.mulf %28, %29 : vector<2x48xf32>
    %31 = arith.addf %25, %30 : vector<2x48xf32>
    %c0_19 = arith.constant 0 : index
    %c0_20 = arith.constant 0 : index
    %32 = vector.load %arg3[%c0_19, %c0_20] : memref<2x2xf32, #tpu.memory_space<vmem>>, vector<2x1xf32>
    %c5 = arith.constant 5 : index
    %c0_21 = arith.constant 0 : index
    %33 = vector.load %arg5[%c5, %c0_21] : memref<16x128xf32, #tpu.memory_space<vmem>>, vector<1x48xf32>
    %34 = vector.broadcast %32 : vector<2x1xf32> to vector<2x48xf32>
    %35 = vector.broadcast %33 : vector<1x48xf32> to vector<2x48xf32>
    %36 = arith.mulf %34, %35 : vector<2x48xf32>
    %37 = arith.addf %31, %36 : vector<2x48xf32>
    %c0_22 = arith.constant 0 : index
    %c1_23 = arith.constant 1 : index
    %38 = vector.load %arg3[%c0_22, %c1_23] : memref<2x2xf32, #tpu.memory_space<vmem>>, vector<2x1xf32>
    %c6 = arith.constant 6 : index
    %c0_24 = arith.constant 0 : index
    %39 = vector.load %arg5[%c6, %c0_24] : memref<16x128xf32, #tpu.memory_space<vmem>>, vector<1x48xf32>
    %40 = vector.broadcast %38 : vector<2x1xf32> to vector<2x48xf32>
    %41 = vector.broadcast %39 : vector<1x48xf32> to vector<2x48xf32>
    %42 = arith.mulf %40, %41 : vector<2x48xf32>
    %43 = arith.addf %37, %42 : vector<2x48xf32>
    %c7 = arith.constant 7 : index
    %c0_25 = arith.constant 0 : index
    %44 = vector.load %arg5[%c7, %c0_25] : memref<16x128xf32, #tpu.memory_space<vmem>>, vector<1x48xf32>
    %45 = vector.broadcast %44 : vector<1x48xf32> to vector<2x48xf32>
    %46 = arith.addf %43, %45 : vector<2x48xf32>
    %cst_26 = arith.constant 0.000000e+00 : f32
    %47 = vector.broadcast %cst_26 : f32 to vector<2x48xf32>
    %48 = arith.maximumf %46, %47 : vector<2x48xf32>
    %c160 = arith.constant 160 : index
    %c0_27 = arith.constant 0 : index
    %49 = vector.load %arg4[%c160, %c0_27] : memref<272x128xf32, #tpu.memory_space<vmem>>, vector<64x32xf32>
    %cst_28 = arith.constant dense<0.000000e+00> : vector<2x32xf32>
    %50 = tpu.matmul %14, %49, %cst_28 {dimension_numbers = #tpu.dot_dimension_numbers<[1], [0], [0], [1], [0, 0, 1, 1], [], []>} : vector<2x64xf32>, vector<64x32xf32>, vector<2x32xf32> -> vector<2x32xf32>
    %c224 = arith.constant 224 : index
    %c0_29 = arith.constant 0 : index
    %51 = vector.load %arg4[%c224, %c0_29] : memref<272x128xf32, #tpu.memory_space<vmem>>, vector<48x32xf32>
    %cst_30 = arith.constant dense<0.000000e+00> : vector<2x32xf32>
    %52 = tpu.matmul %48, %51, %cst_30 {dimension_numbers = #tpu.dot_dimension_numbers<[1], [0], [0], [1], [0, 0, 1, 1], [], []>} : vector<2x48xf32>, vector<48x32xf32>, vector<2x32xf32> -> vector<2x32xf32>
    %53 = arith.addf %50, %52 : vector<2x32xf32>
    %c8 = arith.constant 8 : index
    %c0_31 = arith.constant 0 : index
    %54 = vector.load %arg5[%c8, %c0_31] : memref<16x128xf32, #tpu.memory_space<vmem>>, vector<1x32xf32>
    %55 = vector.broadcast %54 : vector<1x32xf32> to vector<2x32xf32>
    %56 = arith.addf %53, %55 : vector<2x32xf32>
    %cst_32 = arith.constant 0.000000e+00 : f32
    %57 = vector.broadcast %cst_32 : f32 to vector<2x32xf32>
    %58 = arith.maximumf %56, %57 : vector<2x32xf32>
    %c9 = arith.constant 9 : index
    %c0_33 = arith.constant 0 : index
    %59 = vector.load %arg5[%c9, %c0_33] : memref<16x128xf32, #tpu.memory_space<vmem>>, vector<1x32xf32>
    %60 = vector.broadcast %59 : vector<1x32xf32> to vector<2x32xf32>
    %61 = arith.mulf %58, %60 : vector<2x32xf32>
    %cst_34 = arith.constant dense<0.000000e+00> : vector<2xf32>
    %62 = vector.multi_reduction <add>, %61, %cst_34 [1] : vector<2x32xf32> to vector<2xf32>
    %63 = vector.shape_cast %62 : vector<2xf32> to vector<2x1xf32>
    %c10 = arith.constant 10 : index
    %c0_35 = arith.constant 0 : index
    %64 = vector.load %arg5[%c10, %c0_35] : memref<16x128xf32, #tpu.memory_space<vmem>>, vector<1x1xf32>
    %65 = vector.broadcast %64 : vector<1x1xf32> to vector<2x1xf32>
    %66 = arith.addf %63, %65 : vector<2x1xf32>
    %c0_36 = arith.constant 0 : index
    %c0_37 = arith.constant 0 : index
    %67 = vector.load %arg6[%c0_36, %c0_37] : memref<2x1xf32, #tpu.memory_space<vmem>>, vector<2x1xf32>
    tpu.vector_store %arg6[%c0_36, %c0_37], %66 {strides = array<i32>} : memref<2x1xf32, #tpu.memory_space<vmem>>, vector<2x1xf32>,
    return
  }
}

</mosaic_0001>

<llo_original>
// kernel: critic_forward.1
$region0: #{critic_forward.1}
  #allocation0 [shape = 'u32[]', space=smem, size = 0x4, offset = 0x4, fixed_abs, tag = 'smem constant byte address 0x4 - core index']
  #allocation1 [shape = 'u32[72,128]{1,0:T(1,128)}', space=vmem, size = 0x9000, scoped, tag = 'internal scratch']
  %s0 = inlined_call_operand.vmem [shape: f32[2,32], index: 0, kind: input, shape index: {}]
  %s1 = inlined_call_operand.vmem [shape: f32[2,2], index: 1, kind: input, shape index: {}]
  %s2 = inlined_call_operand.vmem [shape: f32[2,1], index: 2, kind: input, shape index: {}]
  %s3 = inlined_call_operand.vmem [shape: f32[2,2], index: 3, kind: input, shape index: {}]
  %s4 = inlined_call_operand.hbm [shape: f32[272,128], index: 4, kind: input, shape index: {}]
  %s5 = inlined_call_operand.hbm [shape: f32[16,128], index: 5, kind: input, shape index: {}]
  %s6 = inlined_call_operand.vmem [shape: f32[2,1], index: 6, kind: output, shape index: {}]
  %s7 = sld [smem:[#allocation0]]
  $region42: #{critic_forward.1} parent=0
    _
  %s9 = ssub.s32 1, %s7
  %s10 = scalar_select 0, %s9, %s7
  $region1: #{critic_forward.1} parent=0
    #allocation2 [shape = 'u8[139264]{0}', space=vmem, size = 0x22000, scoped, tag = 'input window, operand 4, single buffered']
    #allocation3 [shape = 's32[1]{0}', space=sflag, size = 0x4, scoped, tag = 'scoped memory for critic_forward.1']
    #allocation4 [shape = 'u8[8192]{0}', space=vmem, size = 0x2000, scoped, tag = 'input window, operand 5, single buffered']
    #allocation5 [shape = 's32[1]{0}', space=sflag, size = 0x4, scoped, tag = 'scoped memory for critic_forward.1']
    %11 = vsyncpa [#allocation3], 0
    %12 = vsyncpa [#allocation5], 0
    // Predicated region
    $region2: #{critic_forward.1} parent=1 // pred_check
      _
    $region3: #{critic_forward.1} parent=1 // pred_check_branch
      %14 = sbr.rel (0) target = $region5
    $region4: #{critic_forward.1} parent=1 // pred_region
      _
    $region5: #{critic_forward.1} parent=1 // pred_fallthru
      _
    // Predicated region
    $region6: #{critic_forward.1} parent=1 // pred_check
      _
    $region7: #{critic_forward.1} parent=1 // pred_check_branch
      %16 = sbr.rel (0) target = $region9
    $region8: #{critic_forward.1} parent=1 // pred_region
      _
    $region9: #{critic_forward.1} parent=1 // pred_fallthru
      _
    // Predicated region
    $region10: #{critic_forward.1} parent=1 // pred_check
      _
    $region11: #{critic_forward.1} parent=1 // pred_check_branch
      %18 = sbr.rel (0) target = $region13
    $region12: #{critic_forward.1} parent=1 // pred_region
      _
    $region13: #{critic_forward.1} parent=1 // pred_fallthru
      _
    // Predicated region
    $region14: #{critic_forward.1} parent=1 // pred_check
      _
    $region15: #{critic_forward.1} parent=1 // pred_check_branch
      %20 = sbr.rel (0) target = $region17
    $region16: #{critic_forward.1} parent=1 // pred_region
      _
    $region17: #{critic_forward.1} parent=1 // pred_fallthru
      _
    // Predicated region
    $region18: #{critic_forward.1} parent=1 // pred_check
      _
    $region19: #{critic_forward.1} parent=1 // pred_check_branch
      %22 = sbr.rel (0) target = $region21
    $region20: #{critic_forward.1} parent=1 // pred_region
      %24 = vsyncadd [#allocation3], 0
      %s25 = sshll.u32 %s4, 4
      %s26 = int_to_ptr.hbm [resolvable:$true] %s25
      %s27 = sshll.u32 [#allocation2], 4
      %s28 = int_to_ptr.vmem [resolvable:$true] %s27
      %33 = dma.hbm_to_vmem [thread:$0]  %s26, 4352, %s28, [#allocation3], 128, 128, 8
    $region21: #{critic_forward.1} parent=1 // pred_fallthru
      _
    // Predicated region
    $region22: #{critic_forward.1} parent=1 // pred_check
      _
    $region23: #{critic_forward.1} parent=1 // pred_check_branch
      %35 = sbr.rel (0) target = $region25
    $region24: #{critic_forward.1} parent=1 // pred_region
      %37 = vsyncadd [#allocation5], 0
      %s38 = sshll.u32 %s5, 4
      %s39 = int_to_ptr.hbm [resolvable:$true] %s38
      %s40 = sshll.u32 [#allocation4], 4
      %s41 = int_to_ptr.vmem [resolvable:$true] %s40
      %46 = dma.hbm_to_vmem [thread:$0]  %s39, 256, %s41, [#allocation5], 128, 128, 8
    $region25: #{critic_forward.1} parent=1 // pred_fallthru
      _
    // Predicated region
    $region26: #{critic_forward.1} parent=1 // pred_check
      _
    $region27: #{critic_forward.1} parent=1 // pred_check_branch
      %48 = sbr.rel (0) target = $region29
    $region28: #{critic_forward.1} parent=1 // pred_region
      %50 = dma.done [#allocation3], 4352
    $region29: #{critic_forward.1} parent=1 // pred_fallthru
      _
    // Predicated region
    $region30: #{critic_forward.1} parent=1 // pred_check
      _
    $region31: #{critic_forward.1} parent=1 // pred_check_branch
      %52 = sbr.rel (0) target = $region33
    $region32: #{critic_forward.1} parent=1 // pred_region
      %54 = dma.done [#allocation5], 256
    $region33: #{critic_forward.1} parent=1 // pred_fallthru
      _
    %v55 = vld [vmem:[%s0] sm:$0x3]
    %v56 = vld [vmem:[#allocation2] sm:$0xff]
    %v57 = vld [vmem:[#allocation2 + $0x8] sm:$0xff]
    %v58 = vld [vmem:[#allocation2 + $0x10] sm:$0xff]
    %v59 = vld [vmem:[#allocation2 + $0x18] sm:$0xff]
    %v60 = vld [vmem:[#allocation4] sm:$0x1]
    %v61 = vperm.slane %v60, 0
    %vm62 = vcmask 261120
    %v64 = vsel %vm62, %v55, 0
    %66 = vmatpush.msra.mxu0 0.0
    %67 = vmatpush.msra.mxu0 0.0
    %68 = vmatpush.msra.mxu0 0.0
    %69 = vmatpush.msra.mxu0 0.0
    %70 = vmatpush.msra.mxu0 0.0
    %71 = vmatpush.msra.mxu0 0.0
    %72 = vmatpush.msra.mxu0 0.0
    %73 = vmatpush.msra.mxu0 0.0
    %74 = vmatpush.msra.mxu0 0.0
    %75 = vmatpush.msra.mxu0 0.0
    %76 = vmatpush.msra.mxu0 0.0
    %77 = vmatpush.msra.mxu0 0.0
    %78 = vmatpush.msra.mxu0 %v59
    %79 = vmatpush.msra.mxu0 %v58
    %80 = vmatpush.msra.mxu0 %v57
    %81 = vmatpush.msra.mxu0 %v56
    %82 = vmatmul.f32.gmra.mxu0 %v64
    %v83 = vpop.f32.mrf.mxu0
    %v84 = vadd.f32 %v61, %v83
    %85 = vdwg.mxu0
    %v86 = vmax.f32 %v84, 0.0
    %v87 = vld [vmem:[#allocation2 + $0x20] sm:$0xff]
    %v88 = vld [vmem:[#allocation2 + $0x28] sm:$0xff]
    %v89 = vld [vmem:[#allocation2 + $0x30] sm:$0xff]
    %v90 = vld [vmem:[#allocation2 + $0x38] sm:$0xff]
    %v91 = vld [vmem:[#allocation2 + $0x40] sm:$0xff]
    %v92 = vld [vmem:[#allocation2 + $0x48] sm:$0xff]
    %v93 = vld [vmem:[#allocation2 + $0x50] sm:$0xff]
    %v94 = vld [vmem:[#allocation2 + $0x58] sm:$0xff]
    %v95 = vld [vmem:[#allocation2 + $0x60] sm:$0xff]
    %v96 = vld [vmem:[#allocation2 + $0x68] sm:$0xff]
    %v97 = vld [vmem:[#allocation2 + $0x70] sm:$0xff]
    %v98 = vld [vmem:[#allocation2 + $0x78] sm:$0xff]
    %v99 = vld [vmem:[#allocation2 + $0x80] sm:$0xff]
    %v100 = vld [vmem:[#allocation2 + $0x88] sm:$0xff]
    %v101 = vld [vmem:[#allocation2 + $0x90] sm:$0xff]
    %v102 = vld [vmem:[#allocation2 + $0x98] sm:$0xff]
    %v103 = vld [vmem:[#allocation4 + $0x1] sm:$0x1]
    %v104 = vperm.slane %v103, 0
    %105 = vmatpush.msra.mxu0 %v102
    %106 = vmatpush.msra.mxu0 %v101
    %107 = vmatpush.msra.mxu0 %v100
    %108 = vmatpush.msra.mxu0 %v99
    %109 = vmatpush.msra.mxu0 %v98
    %110 = vmatpush.msra.mxu0 %v97
    %111 = vmatpush.msra.mxu0 %v96
    %112 = vmatpush.msra.mxu0 %v95
    %113 = vmatpush.msra.mxu0 %v94
    %114 = vmatpush.msra.mxu0 %v93
    %115 = vmatpush.msra.mxu0 %v92
    %116 = vmatpush.msra.mxu0 %v91
    %117 = vmatpush.msra.mxu0 %v90
    %118 = vmatpush.msra.mxu0 %v89
    %119 = vmatpush.msra.mxu0 %v88
    %120 = vmatpush.msra.mxu0 %v87
    %121 = vmatmul.f32.gmra.mxu0 %v86
    %v122 = vpop.f32.mrf.mxu0
    %v123 = vadd.f32 %v104, %v122
    %124 = vdwg.mxu0
    %v125 = vmax.f32 %v123, 0.0
    %v126 = vld [vmem:[%s1] sm:$0x3]
    %v127 = vld [vmem:[#allocation4 + $0x2] sm:$0x1]
    %129 = vset.pattern.permute.xlu0 0
    %130 = vperm.xlu0 %129, %v126
    %v131 = vpop.permute.xlu0 %130
    %v133 = vperm.slane %v127, 0
    %v134 = vmul.f32 %v131, %v133
    %v135 = vld [vmem:[#allocation4 + $0x3] sm:$0x1]
    %136 = vset.pattern.permute.xlu0 1
    %137 = vperm.xlu0 %136, %v126
    %v138 = vpop.permute.xlu0 %137
    %v140 = vperm.slane %v135, 0
    %v141 = vmul.f32 %v138, %v140
    %v142 = vadd.f32 %v134, %v141
    %v143 = vld [vmem:[%s2] sm:$0x3]
    %v144 = vld [vmem:[#allocation4 + $0x4] sm:$0x1]
    %146 = vset.pattern.permute.xlu0 0
    %147 = vperm.xlu0 %146, %v143
    %v148 = vpop.permute.xlu0 %147
    %v150 = vperm.slane %v144, 0
    %v151 = vmul.f32 %v148, %v150
    %v152 = vadd.f32 %v142, %v151
    %v153 = vld [vmem:[%s3] sm:$0x3]
    %v154 = vld [vmem:[#allocation4 + $0x5] sm:$0x1]
    %156 = vset.pattern.permute.xlu0 0
    %157 = vperm.xlu0 %156, %v153
    %v158 = vpop.permute.xlu0 %157
    %v160 = vperm.slane %v154, 0
    %v161 = vmul.f32 %v158, %v160
    %v162 = vadd.f32 %v152, %v161
    %v163 = vld [vmem:[#allocation4 + $0x6] sm:$0x1]
    %164 = vset.pattern.permute.xlu0 1
    %165 = vperm.xlu0 %164, %v153
    %v166 = vpop.permute.xlu0 %165
    %v168 = vperm.slane %v163, 0
    %v169 = vmul.f32 %v166, %v168
    %v170 = vadd.f32 %v162, %v169
    %v171 = vld [vmem:[#allocation4 + $0x7] sm:$0x1]
    %v172 = vperm.slane %v171, 0
    %v173 = vadd.f32 %v170, %v172
    %v174 = vmax.f32 %v173, 0.0
    %v175 = vld [vmem:[#allocation2 + $0xa0] sm:$0xff]
    %v176 = vld [vmem:[#allocation2 + $0xa8] sm:$0xff]
    %v177 = vld [vmem:[#allocation2 + $0xb0] sm:$0xff]
    %v178 = vld [vmem:[#allocation2 + $0xb8] sm:$0xff]
    %v179 = vld [vmem:[#allocation2 + $0xc0] sm:$0xff]
    %v180 = vld [vmem:[#allocation2 + $0xc8] sm:$0xff]
    %v181 = vld [vmem:[#allocation2 + $0xd0] sm:$0xff]
    %v182 = vld [vmem:[#allocation2 + $0xd8] sm:$0xff]
    %v183 = vld [vmem:[#allocation2 + $0xe0] sm:$0xff]
    %v184 = vld [vmem:[#allocation2 + $0xe8] sm:$0xff]
    %v185 = vld [vmem:[#allocation2 + $0xf0] sm:$0xff]
    %v186 = vld [vmem:[#allocation2 + $0xf8] sm:$0xff]
    %v187 = vld [vmem:[#allocation2 + $0x100] sm:$0xff]
    %v188 = vld [vmem:[#allocation2 + $0x108] sm:$0xff]
    %vm189 = vcmask 392192
    %v191 = vsel %vm189, %v174, 0
    %193 = vmatpush.msra.mxu0 0.0
    %194 = vmatpush.msra.mxu0 0.0
    %195 = vmatpush.msra.mxu0 0.0
    %196 = vmatpush.msra.mxu0 0.0
    %197 = vmatpush.msra.mxu0 0.0
    %198 = vmatpush.msra.mxu0 0.0
    %199 = vmatpush.msra.mxu0 0.0
    %200 = vmatpush.msra.mxu0 0.0
    %201 = vmatpush.msra.mxu0 0.0
    %202 = vmatpush.msra.mxu0 0.0
    %203 = vmatpush.msra.mxu0 %v188
    %204 = vmatpush.msra.mxu0 %v187
    %205 = vmatpush.msra.mxu0 %v186
    %206 = vmatpush.msra.mxu0 %v185
    %207 = vmatpush.msra.mxu0 %v184
    %208 = vmatpush.msra.mxu0 %v183
    %209 = vmatmul.f32.gmra.mxu0 %v191
    %v210 = vpop.f32.mrf.mxu0
    %v211 = vadd.f32 0.0, %v210
    %212 = vdwg.mxu0
    %vm213 = vcmask 523264
    %v215 = vsel %vm213, %v125, 0
    %217 = vmatpush.msra.mxu0 0.0
    %218 = vmatpush.msra.mxu0 0.0
    %219 = vmatpush.msra.mxu0 0.0
    %220 = vmatpush.msra.mxu0 0.0
    %221 = vmatpush.msra.mxu0 0.0
    %222 = vmatpush.msra.mxu0 0.0
    %223 = vmatpush.msra.mxu0 0.0
    %224 = vmatpush.msra.mxu0 0.0
    %225 = vmatpush.msra.mxu0 %v182
    %226 = vmatpush.msra.mxu0 %v181
    %227 = vmatpush.msra.mxu0 %v180
    %228 = vmatpush.msra.mxu0 %v179
    %229 = vmatpush.msra.mxu0 %v178
    %230 = vmatpush.msra.mxu0 %v177
    %231 = vmatpush.msra.mxu0 %v176
    %232 = vmatpush.msra.mxu0 %v175
    %233 = vmatmul.f32.gmra.mxu0 %v215
    %v234 = vpop.f32.mrf.mxu0
    %v235 = vadd.f32 %v211, %v234
    %236 = vdwg.mxu0
    %v237 = vld [vmem:[#allocation4 + $0x8] sm:$0x1]
    %v238 = vperm.slane %v237, 0
    %v239 = vadd.f32 %v235, %v238
    %v240 = vmax.f32 %v239, 0.0
    %v241 = vld [vmem:[#allocation4 + $0x9] sm:$0x1]
    %v242 = vperm.slane %v241, 0
    %v243 = vmul.f32 %v240, %v242
    %vm244 = vcmask 254976
    %v245 = vsel %vm244, %v243, 0.0
    %246 = vadd.xlane.f32.xlu0 %v245
    %v247 = vpop.xlane.xlu0 %246
    %v248 = vld [vmem:[#allocation4 + $0xa] sm:$0x1]
    %v249 = vperm.slane %v248, 0
    %v250 = vadd.f32 %v247, %v249
    %vm251 = vcmask 1024
    %252 = vst.msk [vmem:[%s6] sm:$0x3] %vm251, %v250
    // Predicated region
    $region34: #{critic_forward.1} parent=1 // pred_check
      _
    $region35: #{critic_forward.1} parent=1 // pred_check_branch
      %254 = sbr.rel (0) target = $region37
    $region36: #{critic_forward.1} parent=1 // pred_region
      _
    $region37: #{critic_forward.1} parent=1 // pred_fallthru
      _
    // Predicated region
    $region38: #{critic_forward.1} parent=1 // pred_check
      _
    $region39: #{critic_forward.1} parent=1 // pred_check_branch
      %256 = sbr.rel (0) target = $region41
    $region40: #{critic_forward.1} parent=1 // pred_region
      _
    $region41: #{critic_forward.1} parent=1 // pred_fallthru
      _
    %257 = vsyncpa [#allocation3], 1
    %258 = vsyncpa [#allocation5], 1

</llo_original>
